<compile_context>
chip_gen: v6e
topology: v6e:2x2x1
jax: 0.10.0
libtpu: 0.0.40
codegen_flags: <defaults>
</compile_context>

<pallas_src>
import functools

import jax
import jax.numpy as jnp
import numpy as np
from jax.experimental import pallas as pl
from jax.experimental.pallas import tpu as pltpu


def _dice_ce_kernel(pred_ref, targ_ref, out_ref, acc_ref, *, hw, tile_p, need_mask):
    """Blocks: pred/targ (1, C, tile_p); out (1, 4, tile_p); acc (4, tile_p) VMEM."""
    j = pl.program_id(1)                     # position-tile index (reduction axis)

    p = pred_ref[0].astype(jnp.float32)      # (C, tile_p)
    t = targ_ref[0].astype(jnp.float32)      # (C, tile_p)

    if need_mask:
        # Ragged last tile: zero out out-of-range columns.  Zeroed columns
        # contribute 0 to every accumulated quantity (incl. CE, since t == 0).
        idx = jax.lax.broadcasted_iota(jnp.int32, p.shape, 1)
        valid = (j * tile_p + idx) < hw
        zero = jnp.zeros_like(p)
        p = jnp.where(valid, p, zero)
        t = jnp.where(valid, t, zero)

    # Channel-axis (sublane) reductions only; everything stays lane-shaped.
    col_pt = jnp.sum(p * t, axis=0, keepdims=True)        # (1, tile_p)  sum_c p*t
    col_p = jnp.sum(p, axis=0, keepdims=True)              # (1, tile_p)  sum_c p
    col_t = jnp.sum(t, axis=0, keepdims=True)              # (1, tile_p)  sum_c t

    # Soft-target CE per column: -sum_c t_c*(p_c - lse) = lse*sum_c t_c - sum_c t_c*p_c
    m = jnp.max(p, axis=0, keepdims=True)                   # (1, tile_p)
    lse = m + jnp.log(jnp.sum(jnp.exp(p - m), axis=0, keepdims=True))
    ce_col = lse * col_t - col_pt                            # (1, tile_p)

    update = jnp.concatenate([col_pt, col_p, col_t, ce_col], axis=0)  # (4, tile_p)

    @pl.when(j == 0)
    def _init():
        acc_ref[...] = update

    @pl.when(j > 0)
    def _accumulate():
        acc_ref[...] = acc_ref[...] + update

    @pl.when(j == pl.num_programs(1) - 1)
    def _finalize():
        out_ref[0] = acc_ref[...]            # per-n lane-shaped partial sums


def dice_ce_loss(pred, target, dice_weight, smooth=1e-5, tile_p=None):
    """pred, target: (N, C, H, W) arrays (NCHW, like the PyTorch module)."""
    N, C, H, W = pred.shape
    hw = H * W
    n_pos = N * hw

    # Free reshape (no data movement): NCHW -> (N, C, H*W).  Keep native dtype.
    pred3 = pred.reshape(N, C, hw)
    targ3 = target.reshape(N, C, hw)

    # Pick a wide lane tile (multiple of 128), capped so that
    # 2 inputs x 2 pipeline buffers stay comfortably inside scoped VMEM (v7x-safe).
    if tile_p is None:
        bytes_per_lane = int(C) * pred3.dtype.itemsize          # per input column
        max_lanes = (8 * 1024 * 1024) // max(1, 4 * bytes_per_lane)
        tile_p = min(8192, max_lanes)
    tile_p = max(128, (int(tile_p) // 128) * 128)
    tile_p = min(tile_p, pl.cdiv(hw, 128) * 128)                 # don't exceed hw
    n_j = pl.cdiv(hw, tile_p)
    need_mask = (hw % tile_p) != 0

    kernel = functools.partial(
        _dice_ce_kernel, hw=hw, tile_p=tile_p, need_mask=need_mask)

    # NOTE: if the DMA is still exposed on v6e, pipeline_mode=pl.Buffered(3) on the
    # two input BlockSpecs is a cheap follow-up (tiles are small with small C).
    partial = pl.pallas_call(
        kernel,
        out_shape=jax.ShapeDtypeStruct((N, 4, tile_p), jnp.float32),
        grid_spec=pltpu.PrefetchScalarGridSpec(
            num_scalar_prefetch=0,
            grid=(N, n_j),
            in_specs=[
                pl.BlockSpec((1, C, tile_p), lambda n, j: (n, 0, j)),
                pl.BlockSpec((1, C, tile_p), lambda n, j: (n, 0, j)),
            ],
            out_specs=pl.BlockSpec((1, 4, tile_p), lambda n, j: (n, 0, 0)),
            scratch_shapes=[pltpu.VMEM((4, tile_p), jnp.float32)],
        ),
        compiler_params=pltpu.CompilerParams(
            dimension_semantics=("parallel", "arbitrary"),
            vmem_limit_bytes=48 * 1024 * 1024,
        ),
    )(pred3, targ3)

    # Tiny epilogue: one cross-lane reduce + scalar arithmetic (negligible).
    sums = jnp.sum(partial, axis=(0, 2))                # (4,)
    inter, sum_p, sum_t, ce_sum = sums[0], sums[1], sums[2], sums[3]
    dice = (2.0 * inter + smooth) / (sum_p + sum_t + smooth)
    loss_dice = 1.0 - dice
    loss_ce = ce_sum / float(n_pos)
    return (1.0 - dice_weight) * loss_ce + dice_weight * loss_dice


def _reference(pred, target, dice_weight, smooth=1e-5):
    p = pred.astype(jnp.float32)
    t = target.astype(jnp.float32)
    inter = jnp.sum(p * t)
    dice = (2.0 * inter + smooth) / (jnp.sum(p) + jnp.sum(t) + smooth)
    loss_dice = 1.0 - dice
    logsm = jax.nn.log_softmax(p, axis=1)            # softmax over channel dim (NCHW)
    ce = jnp.mean(jnp.sum(-t * logsm, axis=1))       # mean over N*H*W positions
    return (1.0 - dice_weight) * ce + dice_weight * loss_dice


if __name__ == "__main__":
    key = jax.random.PRNGKey(0)
    k1, k2, k3, k4 = jax.random.split(key, 4)

    dice_weight = 0.5  # deterministic "module init" parameter

    # Primary shape (matches the module's expected NCHW usage).
    N, C, H, W = 2, 4, 16, 16
    pred = jax.random.normal(k1, (N, C, H, W), dtype=jnp.float32)
    target = jax.nn.softmax(
        jax.random.normal(k2, (N, C, H, W), dtype=jnp.float32), axis=1)

    loss = jax.block_until_ready(dice_ce_loss(pred, target, dice_weight))
    ref = jax.block_until_ready(_reference(pred, target, dice_weight))
    np.testing.assert_allclose(np.asarray(loss), np.asarray(ref), rtol=1e-5, atol=1e-5)

    # Secondary check: ragged position dim + multiple reduction tiles (masking path).
    N2, C2, H2, W2 = 2, 4, 10, 13
    pred2 = jax.random.normal(k3, (N2, C2, H2, W2), dtype=jnp.float32)
    targ2 = jax.nn.softmax(
        jax.random.normal(k4, (N2, C2, H2, W2), dtype=jnp.float32), axis=1)

    loss2 = jax.block_until_ready(dice_ce_loss(pred2, targ2, dice_weight, tile_p=128))
    ref2 = jax.block_until_ready(_reference(pred2, targ2, dice_weight))
    np.testing.assert_allclose(np.asarray(loss2), np.asarray(ref2), rtol=1e-5, atol=1e-5)

    print("KERNEL_OK")
</pallas_src>

<mosaic_0001>
module attributes {stable_mosaic.version = 11 : i64} {
  func.func @_dice_ce_kernel(%arg0: i32, %arg1: i32, %arg2: memref<1x4x256xf32, #tpu.memory_space<vmem>>, %arg3: memref<1x4x256xf32, #tpu.memory_space<vmem>>, %arg4: memref<1x4x256xf32, #tpu.memory_space<vmem>>, %arg5: memref<4x256xf32, #tpu.memory_space<vmem>>) attributes {dimension_semantics = [#tpu.dimension_semantics<parallel>, #tpu.dimension_semantics<arbitrary>], iteration_bounds = array<i64: 2, 1>, scalar_prefetch = 0 : i64, scratch_operands = 1 : i64, tpu.core_type = #tpu.core_type<tc>, window_params = [{transform_indices = @transform_0, window_bounds = array<i64: 1, 4, 256>}, {transform_indices = @transform_1, window_bounds = array<i64: 1, 4, 256>}, {transform_indices = @transform_2, window_bounds = array<i64: 1, 4, 256>}]} {
    %c0 = arith.constant 0 : index
    %c0_0 = arith.constant 0 : index
    %c0_1 = arith.constant 0 : index
    %0 = vector.load %arg2[%c0, %c0_0, %c0_1] : memref<1x4x256xf32, #tpu.memory_space<vmem>>, vector<1x4x256xf32>
    %1 = vector.shape_cast %0 : vector<1x4x256xf32> to vector<4x256xf32>
    %c0_2 = arith.constant 0 : index
    %c0_3 = arith.constant 0 : index
    %c0_4 = arith.constant 0 : index
    %2 = vector.load %arg3[%c0_2, %c0_3, %c0_4] : memref<1x4x256xf32, #tpu.memory_space<vmem>>, vector<1x4x256xf32>
    %3 = vector.shape_cast %2 : vector<1x4x256xf32> to vector<4x256xf32>
    %4 = arith.mulf %1, %3 : vector<4x256xf32>
    %cst = arith.constant dense<0.000000e+00> : vector<256xf32>
    %5 = vector.multi_reduction <add>, %4, %cst [0] : vector<4x256xf32> to vector<256xf32>
    %6 = vector.shape_cast %5 : vector<256xf32> to vector<1x256xf32>
    %cst_5 = arith.constant dense<0.000000e+00> : vector<256xf32>
    %7 = vector.multi_reduction <add>, %1, %cst_5 [0] : vector<4x256xf32> to vector<256xf32>
    %8 = vector.shape_cast %7 : vector<256xf32> to vector<1x256xf32>
    %cst_6 = arith.constant dense<0.000000e+00> : vector<256xf32>
    %9 = vector.multi_reduction <add>, %3, %cst_6 [0] : vector<4x256xf32> to vector<256xf32>
    %10 = vector.shape_cast %9 : vector<256xf32> to vector<1x256xf32>
    %cst_7 = arith.constant dense<0xFF800000> : vector<256xf32>
    %11 = vector.multi_reduction <maximumf>, %1, %cst_7 [0] : vector<4x256xf32> to vector<256xf32>
    %12 = vector.shape_cast %11 : vector<256xf32> to vector<1x256xf32>
    %13 = vector.broadcast %12 : vector<1x256xf32> to vector<4x256xf32>
    %14 = arith.subf %1, %13 : vector<4x256xf32>
    %15 = math.exp %14 : vector<4x256xf32>
    %cst_8 = arith.constant dense<0.000000e+00> : vector<256xf32>
    %16 = vector.multi_reduction <add>, %15, %cst_8 [0] : vector<4x256xf32> to vector<256xf32>
    %17 = vector.shape_cast %16 : vector<256xf32> to vector<1x256xf32>
    %18 = math.log %17 : vector<1x256xf32>
    %19 = arith.addf %12, %18 : vector<1x256xf32>
    %20 = arith.mulf %19, %10 : vector<1x256xf32>
    %21 = arith.subf %20, %6 : vector<1x256xf32>
    %22 = tpu.concatenate %6, %8, %10, %21 in 0 : vector<1x256xf32>, vector<1x256xf32>, vector<1x256xf32>, vector<1x256xf32> -> vector<4x256xf32>
    %c0_i32 = arith.constant 0 : i32
    %23 = arith.cmpi eq, %arg1, %c0_i32 : i32
    %24 = arith.extui %23 : i1 to i32
    %c0_i32_9 = arith.constant 0 : i32
    %25 = arith.cmpi ne, %24, %c0_i32_9 : i32
    scf.if %25 {
      %c0_14 = arith.constant 0 : index
      %c0_15 = arith.constant 0 : index
      %32 = vector.load %arg5[%c0_14, %c0_15] : memref<4x256xf32, #tpu.memory_space<vmem>>, vector<4x256xf32>
      tpu.vector_store %arg5[%c0_14, %c0_15], %22 {strides = array<i32>} : memref<4x256xf32, #tpu.memory_space<vmem>>, vector<4x256xf32>,
    } else {
    }
    %c0_i32_10 = arith.constant 0 : i32
    %26 = arith.cmpi sgt, %arg1, %c0_i32_10 : i32
    %27 = arith.extui %26 : i1 to i32
    %c0_i32_11 = arith.constant 0 : i32
    %28 = arith.cmpi ne, %27, %c0_i32_11 : i32
    scf.if %28 {
      %c0_14 = arith.constant 0 : index
      %c0_15 = arith.constant 0 : index
      %32 = vector.load %arg5[%c0_14, %c0_15] : memref<4x256xf32, #tpu.memory_space<vmem>>, vector<4x256xf32>
      %33 = arith.addf %32, %22 : vector<4x256xf32>
      %c0_16 = arith.constant 0 : index
      %c0_17 = arith.constant 0 : index
      %34 = vector.load %arg5[%c0_16, %c0_17] : memref<4x256xf32, #tpu.memory_space<vmem>>, vector<4x256xf32>
      tpu.vector_store %arg5[%c0_16, %c0_17], %33 {strides = array<i32>} : memref<4x256xf32, #tpu.memory_space<vmem>>, vector<4x256xf32>,
    } else {
    }
    %c0_i32_12 = arith.constant 0 : i32
    %29 = arith.cmpi eq, %arg1, %c0_i32_12 : i32
    %30 = arith.extui %29 : i1 to i32
    %c0_i32_13 = arith.constant 0 : i32
    %31 = arith.cmpi ne, %30, %c0_i32_13 : i32
    scf.if %31 {
      %c0_14 = arith.constant 0 : index
      %c0_15 = arith.constant 0 : index
      %32 = vector.load %arg5[%c0_14, %c0_15] : memref<4x256xf32, #tpu.memory_space<vmem>>, vector<4x256xf32>
      %c0_16 = arith.constant 0 : index
      %c0_17 = arith.constant 0 : index
      %c0_18 = arith.constant 0 : index
      %33 = vector.load %arg4[%c0_16, %c0_17, %c0_18] : memref<1x4x256xf32, #tpu.memory_space<vmem>>, vector<1x4x256xf32>
      %34 = vector.shape_cast %33 : vector<1x4x256xf32> to vector<4x256xf32>
      %35 = vector.shape_cast %32 : vector<4x256xf32> to vector<1x4x256xf32>
      tpu.vector_store %arg4[%c0_16, %c0_17, %c0_18], %35 {strides = array<i32>} : memref<1x4x256xf32, #tpu.memory_space<vmem>>, vector<1x4x256xf32>,
    } else {
    }
    return
  }
  func.func @transform_0(%arg0: i32, %arg1: i32) -> (i32, i32, i32) {
    %c0_i32 = arith.constant 0 : i32
    %c0_i32_0 = arith.constant 0 : i32
    return %arg0, %c0_i32, %arg1 : i32, i32, i32
  }
  func.func @transform_1(%arg0: i32, %arg1: i32) -> (i32, i32, i32) {
    %c0_i32 = arith.constant 0 : i32
    %c0_i32_0 = arith.constant 0 : i32
    return %arg0, %c0_i32, %arg1 : i32, i32, i32
  }
  func.func @transform_2(%arg0: i32, %arg1: i32) -> (i32, i32, i32) {
    %c0_i32 = arith.constant 0 : i32
    %c0_i32_0 = arith.constant 0 : i32
    %c0_i32_1 = arith.constant 0 : i32
    return %arg0, %c0_i32, %c0_i32_0 : i32, i32, i32
  }
}

</mosaic_0001>

<llo_original>
// kernel: tpu_custom_call.1
$region0: #{tpu_custom_call.1}
  #allocation0 [shape = 'u32[]', space=smem, size = 0x4, offset = 0x4, fixed_abs, tag = 'smem constant byte address 0x4 - core index']
  #allocation1 [shape = 'u32[144,128]{1,0:T(1,128)}', space=vmem, size = 0x12000, scoped, tag = 'internal scratch']
  #allocation2 [shape = 'f32[4,256]{1,0:T(4,128)}', space=vmem, size = 0x1000, scoped, tag = 'scratch operand']
  %s0 = inlined_call_operand.hbm [shape: f32[2,4,256], index: 0, kind: input, shape index: {}]
  %s1 = inlined_call_operand.hbm [shape: f32[2,4,256], index: 1, kind: input, shape index: {}]
  %s2 = inlined_call_operand.hbm [shape: f32[2,4,256], index: 2, kind: output, shape index: {}]
  %s3 = sld [smem:[#allocation0]]
  $region61: #{tpu_custom_call.1} parent=0
    _
  %s5 = ssub.s32 1, %s3
  %s6 = scalar_select 0, %s5, %s3
  $region1: #{tpu_custom_call.1} parent=0
    #allocation3 [shape = 'u8[8192]{0}', space=vmem, size = 0x2000, scoped, tag = 'input window, operand 0']
    #allocation4 [shape = 's32[2]{0}', space=sflag, size = 0x8, scoped, tag = 'scoped memory for tpu_custom_call.1']
    #allocation5 [shape = 's32[2]{0}', space=sflag, size = 0x8, scoped, tag = 'scoped memory for tpu_custom_call.1']
    #allocation6 [shape = 'u8[8192]{0}', space=vmem, size = 0x2000, scoped, tag = 'input window, operand 1']
    #allocation7 [shape = 's32[2]{0}', space=sflag, size = 0x8, scoped, tag = 'scoped memory for tpu_custom_call.1']
    #allocation8 [shape = 'u8[8192]{0}', space=vmem, size = 0x2000, scoped, tag = 'output window, operand 0']
    %7 = vsyncpa [#allocation4], 0
    %s8 = scalar_lea.sflag [#allocation4], 1
    %9 = vsyncpa %s8, 0
    %10 = vsyncpa [#allocation7], 0
    %s11 = scalar_lea.sflag [#allocation7], 1
    %12 = vsyncpa %s11, 0
    %13 = vsyncpa [#allocation5], 0
    %s14 = scalar_lea.sflag [#allocation5], 1
    %15 = vsyncpa %s14, 0
    loop: start=0, step=1, limit=4
    $region2: #{tpu_custom_call.1} parent=1 // loop_pre_header
      _
    $region3: #{tpu_custom_call.1} parent=1 // loop_header
      %s17 = sphi 0, %s21
      %p18 = scmp.ge.s32.totalorder %s17, 4
      %s24 = sphi 0, %s36
      %s25 = sphi 0, %s32
      %s26 = sphi 0, %s24
      %s27 = sphi 0, %s25
      %s28 = sphi 0, %s26
      %s29 = sphi 0, %s27
      %s41 = sphi 0, %s43
      %s44 = sphi 0, %s41
      %s45 = sphi 0, %s44
      %s61 = sphi 0, %s45
      %s69 = sphi 0, %s71
      %s72 = sphi 0, %s69
      %s73 = sphi 0, %s72
      %s89 = sphi 0, %s73
      %s95 = sphi 0, %s97
      %s98 = sphi 0, %s95
      %s99 = sphi 0, %s98
      %s115 = sphi 0, %s99
    $region4: #{tpu_custom_call.1} parent=1 // loop_header_branch
      %20 = sbr.rel (%p18) target = $region8
    $region5: #{tpu_custom_call.1} parent=1 // loop_body
      %s22 = ssub.s32 %s17, 1
      %s23 = ssub.s32 %s17, 2
      %s30 = sadd.s32 1, %s25
      %p31 = scmp.ge.s32.totalorder %s30, 1
      %s32 = scalar_select %p31, 0, %s30
      %s33 = sadd.s32 1, %s24
      %s34 = scalar_select %p31, %s33, %s24
      %p35 = scmp.ge.s32.totalorder %s34, 2
      %s36 = scalar_select %p35, 0, %s34
      %s37 = ssub.s32 %s24, %s36
      %s38 = ssub.s32 %s25, %s32
      %s39 = sor.u32 %s37, %s38
      %p40 = scmp.eq.s32.totalorder %s39, 0
      %s42 = sadd.s32 %s41, 1
      %s43 = scalar_select %p40, %s41, %s42
      %p46 = pneg %p40
      %p47 = scmp.eq.s32.totalorder %s17, 1
      %p48 = por %p46, %p47
      %p49 = scmp.ne.s32.totalorder %s41, %s44
      %p50 = scmp.eq.s32.totalorder %s17, 0
      %p51 = por %p49, %p50
      %p52 = scmp.ne.s32.totalorder %s41, %s44
      %p53 = scmp.eq.s32.totalorder %s22, 1
      %p54 = por %p52, %p53
      %p55 = scmp.ne.s32.totalorder %s44, %s45
      %p56 = scmp.eq.s32.totalorder %s22, 0
      %p57 = por %p55, %p56
      %p58 = scmp.ne.s32.totalorder %s44, %s45
      %p59 = scmp.eq.s32.totalorder %s23, 1
      %p60 = por %p58, %p59
      %p62 = scmp.ne.s32.totalorder %s45, %s61
      %p63 = scmp.eq.s32.totalorder %s23, 0
      %p64 = por %p62, %p63
      %s65 = ssub.s32 %s24, %s36
      %s66 = ssub.s32 %s25, %s32
      %s67 = sor.u32 %s65, %s66
      %p68 = scmp.eq.s32.totalorder %s67, 0
      %s70 = sadd.s32 %s69, 1
      %s71 = scalar_select %p68, %s69, %s70
      %p74 = pneg %p68
      %p75 = scmp.eq.s32.totalorder %s17, 1
      %p76 = por %p74, %p75
      %p77 = scmp.ne.s32.totalorder %s69, %s72
      %p78 = scmp.eq.s32.totalorder %s17, 0
      %p79 = por %p77, %p78
      %p80 = scmp.ne.s32.totalorder %s69, %s72
      %p81 = scmp.eq.s32.totalorder %s22, 1
      %p82 = por %p80, %p81
      %p83 = scmp.ne.s32.totalorder %s72, %s73
      %p84 = scmp.eq.s32.totalorder %s22, 0
      %p85 = por %p83, %p84
      %p86 = scmp.ne.s32.totalorder %s72, %s73
      %p87 = scmp.eq.s32.totalorder %s23, 1
      %p88 = por %p86, %p87
      %p90 = scmp.ne.s32.totalorder %s73, %s89
      %p91 = scmp.eq.s32.totalorder %s23, 0
      %p92 = por %p90, %p91
      %s93 = ssub.s32 %s24, %s36
      %p94 = scmp.eq.s32.totalorder %s93, 0
      %s96 = sadd.s32 %s95, 1
      %s97 = scalar_select %p94, %s95, %s96
      %p100 = pneg %p94
      %p101 = scmp.eq.s32.totalorder %s17, 1
      %p102 = por %p100, %p101
      %p103 = scmp.ne.s32.totalorder %s95, %s98
      %p104 = scmp.eq.s32.totalorder %s17, 0
      %p105 = por %p103, %p104
      %p106 = scmp.ne.s32.totalorder %s95, %s98
      %p107 = scmp.eq.s32.totalorder %s22, 1
      %p108 = por %p106, %p107
      %p109 = scmp.ne.s32.totalorder %s98, %s99
      %p110 = scmp.eq.s32.totalorder %s22, 0
      %p111 = por %p109, %p110
      %p112 = scmp.ne.s32.totalorder %s98, %s99
      %p113 = scmp.eq.s32.totalorder %s23, 1
      %p114 = por %p112, %p113
      %p116 = scmp.ne.s32.totalorder %s99, %s115
      %p117 = scmp.eq.s32.totalorder %s23, 0
      %p118 = por %p116, %p117
      %p119 = scmp.le.s32.totalorder 1, %s17
      %p120 = scmp.lt.s32.totalorder %s17, 3
      %p121 = pnand %p119, %p120
      %p122 = pneg %p121
      // Predicated region
      $region9: #{tpu_custom_call.1} parent=5 // pred_check
        _
      $region10: #{tpu_custom_call.1} parent=5 // pred_check_branch
        %124 = sbr.rel (%p121) target = $region12
      $region11: #{tpu_custom_call.1} parent=5 // pred_region
        %s125 = ssub.s32 %s17, 1
      $region12: #{tpu_custom_call.1} parent=5 // pred_fallthru
        _
      %p126 = scmp.lt.s32.totalorder %s17, 2
      // Predicated region
      $region13: #{tpu_custom_call.1} parent=5 // pred_check
        %p127 = pneg %p126
      $region14: #{tpu_custom_call.1} parent=5 // pred_check_branch
        %129 = sbr.rel (%p127) target = $region16
      $region15: #{tpu_custom_call.1} parent=5 // pred_region
        // Predicated region
        $region17: #{tpu_custom_call.1} parent=15 // pred_check
          %p130 = pneg %p51
        $region18: #{tpu_custom_call.1} parent=15 // pred_check_branch
          %132 = sbr.rel (%p130) target = $region20
        $region19: #{tpu_custom_call.1} parent=15 // pred_region
          %s133 = sand.u32 %s41, 1
          %s134 = scalar_lea.sflag [#allocation4], %s133
          %s135 = sand.u32 %s41, 1
          %s136 = smul.addr %s135, 8
          %s137 = scalar_lea.vmem [#allocation3], %s136
          %s138 = smul.u32 2, %s25
          %s140 = ssub.s32 128, 128
          %141 = vsyncadd %s134, %s140
          %s142 = smul.addr %s24, 2
          %s143 = sadd.s32 %s138, %s142
          %s144 = smul.addr %s143, 64
          %s145 = scalar_lea.hbm %s0, %s144
          %s147 = sshll.u32 %s137, 4
          %s148 = int_to_ptr.vmem [resolvable:$true] %s147
          %150 = dma.hbm_to_vmem [thread:$0]  %s145, 128, %s148, %s134
        $region20: #{tpu_custom_call.1} parent=15 // pred_fallthru
          _
        // Predicated region
        $region21: #{tpu_custom_call.1} parent=15 // pred_check
          %p151 = pneg %p79
        $region22: #{tpu_custom_call.1} parent=15 // pred_check_branch
          %153 = sbr.rel (%p151) target = $region24
        $region23: #{tpu_custom_call.1} parent=15 // pred_region
          %s154 = sand.u32 %s69, 1
          %s155 = scalar_lea.sflag [#allocation7], %s154
          %s156 = sand.u32 %s69, 1
          %s157 = smul.addr %s156, 8
          %s158 = scalar_lea.vmem [#allocation6], %s157
          %s159 = smul.u32 2, %s25
          %s161 = ssub.s32 128, 128
          %162 = vsyncadd %s155, %s161
          %s163 = smul.addr %s24, 2
          %s164 = sadd.s32 %s159, %s163
          %s165 = smul.addr %s164, 64
          %s166 = scalar_lea.hbm %s1, %s165
          %s168 = sshll.u32 %s158, 4
          %s169 = int_to_ptr.vmem [resolvable:$true] %s168
          %171 = dma.hbm_to_vmem [thread:$0]  %s166, 128, %s169, %s155
        $region24: #{tpu_custom_call.1} parent=15 // pred_fallthru
          _
      $region16: #{tpu_custom_call.1} parent=5 // pred_fallthru
        _
      %p172 = scmp.le.s32.totalorder 1, %s17
      %p173 = scmp.lt.s32.totalorder %s17, 3
      %p174 = pnand %p172, %p173
      %p175 = pneg %p174
      // Predicated region
      $region25: #{tpu_custom_call.1} parent=5 // pred_check
        _
      $region26: #{tpu_custom_call.1} parent=5 // pred_check_branch
        %177 = sbr.rel (%p174) target = $region28
      $region27: #{tpu_custom_call.1} parent=5 // pred_region
        %s178 = ssub.s32 %s17, 1
        %s179 = sand.u32 %s44, 1
        %s180 = scalar_lea.sflag [#allocation4], %s179
        %s181 = sand.u32 %s44, 1
        %s182 = smul.addr %s181, 8
        %s183 = scalar_lea.vmem [#allocation3], %s182
        // Predicated region
        $region29: #{tpu_custom_call.1} parent=27 // pred_check
          %p184 = pneg %p57
        $region30: #{tpu_custom_call.1} parent=27 // pred_check_branch
          %186 = sbr.rel (%p184) target = $region32
        $region31: #{tpu_custom_call.1} parent=27 // pred_region
          %187 = dma.done %s180, 128
        $region32: #{tpu_custom_call.1} parent=27 // pred_fallthru
          _
        %s188 = sand.u32 %s72, 1
        %s189 = scalar_lea.sflag [#allocation7], %s188
        %s190 = sand.u32 %s72, 1
        %s191 = smul.addr %s190, 8
        %s192 = scalar_lea.vmem [#allocation6], %s191
        // Predicated region
        $region33: #{tpu_custom_call.1} parent=27 // pred_check
          %p193 = pneg %p85
        $region34: #{tpu_custom_call.1} parent=27 // pred_check_branch
          %195 = sbr.rel (%p193) target = $region36
        $region35: #{tpu_custom_call.1} parent=27 // pred_region
          %196 = dma.done %s189, 128
        $region36: #{tpu_custom_call.1} parent=27 // pred_fallthru
          _
        %s197 = sand.u32 %s44, 1
        %s198 = scalar_lea.sflag [#allocation4], %s197
        %s199 = sand.u32 %s44, 1
        %s200 = smul.addr %s199, 8
        %s201 = scalar_lea.vmem [#allocation3], %s200
        %p202 = pneg %p57
        %p203 = pneg %p54
        %s204 = sand.u32 %s72, 1
        %s205 = scalar_lea.sflag [#allocation7], %s204
        %s206 = sand.u32 %s72, 1
        %s207 = smul.addr %s206, 8
        %s208 = scalar_lea.vmem [#allocation6], %s207
        %p209 = pneg %p85
        %p210 = pneg %p82
        %p211 = pneg %p111
        %p212 = pneg %p108
        %s213 = sand.u32 %s98, 1
        %s214 = scalar_lea.sflag [#allocation5], %s213
        %s215 = sand.u32 %s98, 1
        %s216 = smul.addr %s215, 8
        %s217 = scalar_lea.vmem [#allocation8], %s216
        %s218 = smul.u32 2, %s27
        %s219 = smul.u32 2, %s27
        %v220 = vld [vmem:[%s183] sm:$0xff]
        %v221 = vld [vmem:[%s192] sm:$0xff]
        %v222 = vmul.f32 %v220, %v221
        %v224 = vcombine.high %v222, %v222
        %vm226 = vcmask 1043456
        %v227 = vsel %vm226, %v222, 0.0
        %v228 = vrot.slane %v227, 4
        %v229 = vadd.f32 %v227, %v228
        %v230 = vrot.slane %v229, 2
        %v231 = vadd.f32 %v229, %v230
        %v232 = vrot.slane %v231, 1
        %v233 = vadd.f32 %v231, %v232
        %v234 = vsel %vm226, %v224, 0.0
        %v235 = vrot.slane %v234, 4
        %v236 = vadd.f32 %v234, %v235
        %v237 = vrot.slane %v236, 2
        %v238 = vadd.f32 %v236, %v237
        %v239 = vrot.slane %v238, 1
        %v240 = vadd.f32 %v238, %v239
        %v242 = vcombine.high %v220, %v220
        %v244 = vsel %vm226, %v220, 0.0
        %v245 = vrot.slane %v244, 4
        %v246 = vadd.f32 %v244, %v245
        %v247 = vrot.slane %v246, 2
        %v248 = vadd.f32 %v246, %v247
        %v249 = vrot.slane %v248, 1
        %v250 = vadd.f32 %v248, %v249
        %v251 = vsel %vm226, %v242, 0.0
        %v252 = vrot.slane %v251, 4
        %v253 = vadd.f32 %v251, %v252
        %v254 = vrot.slane %v253, 2
        %v255 = vadd.f32 %v253, %v254
        %v256 = vrot.slane %v255, 1
        %v257 = vadd.f32 %v255, %v256
        %v259 = vcombine.high %v221, %v221
        %v261 = vsel %vm226, %v221, 0.0
        %v262 = vrot.slane %v261, 4
        %v263 = vadd.f32 %v261, %v262
        %v264 = vrot.slane %v263, 2
        %v265 = vadd.f32 %v263, %v264
        %v266 = vrot.slane %v265, 1
        %v267 = vadd.f32 %v265, %v266
        %v268 = vsel %vm226, %v259, 0.0
        %v269 = vrot.slane %v268, 4
        %v270 = vadd.f32 %v268, %v269
        %v271 = vrot.slane %v270, 2
        %v272 = vadd.f32 %v270, %v271
        %v273 = vrot.slane %v272, 1
        %v274 = vadd.f32 %v272, %v273
        %v275 = vsel %vm226, %v220, -inf
        %v276 = vrot.slane %v275, 4
        %v277 = vmax.f32 %v275, %v276
        %v278 = vrot.slane %v277, 2
        %v279 = vmax.f32 %v277, %v278
        %v280 = vrot.slane %v279, 1
        %v281 = vmax.f32 %v279, %v280
        %v282 = vsel %vm226, %v242, -inf
        %v283 = vrot.slane %v282, 4
        %v284 = vmax.f32 %v282, %v283
        %v285 = vrot.slane %v284, 2
        %v286 = vmax.f32 %v284, %v285
        %v287 = vrot.slane %v286, 1
        %v288 = vmax.f32 %v286, %v287
        %v291 = vcombine.low %v281, %v288
        %v293 = vsub.f32 %v220, %v291
        %v294 = vmul.f32 %v293, 1.442695
        %v295 = vpow.pop %v294
        %v297 = vcombine.high %v295, %v295
        %v299 = vsel %vm226, %v295, 0.0
        %v300 = vrot.slane %v299, 4
        %v301 = vadd.f32 %v299, %v300
        %v302 = vrot.slane %v301, 2
        %v303 = vadd.f32 %v301, %v302
        %v304 = vrot.slane %v303, 1
        %v305 = vadd.f32 %v303, %v304
        %v306 = vsel %vm226, %v297, 0.0
        %v307 = vrot.slane %v306, 4
        %v308 = vadd.f32 %v306, %v307
        %v309 = vrot.slane %v308, 2
        %v310 = vadd.f32 %v308, %v309
        %v311 = vrot.slane %v310, 1
        %v312 = vadd.f32 %v310, %v311
        %v313 = vlog2.pop %v305
        %v314 = vmul.f32 %v313, 0.6931472
        %v315 = vlog2.pop %v312
        %v316 = vmul.f32 %v315, 0.6931472
        %v317 = vadd.f32 %v281, %v314
        %v318 = vadd.f32 %v288, %v316
        %v319 = vmul.f32 %v317, %v267
        %v320 = vmul.f32 %v318, %v274
        %v321 = vsub.f32 %v319, %v233
        %v322 = vsub.f32 %v320, %v240
        %vm323 = vcmask 1040384
        %v324 = vsel %vm323, %v233, %v250
        %v325 = vsel %vm323, %v240, %v257
        %vm326 = vcmask 1041408
        %v327 = vsel %vm326, %v324, %v267
        %v328 = vsel %vm326, %v325, %v274
        %vm329 = vcmask 1042432
        %v330 = vsel %vm329, %v327, %v321
        %v331 = vsel %vm329, %v328, %v322
        %p332 = scmp.eq.s32.totalorder %s27, 0
        // Predicated region
        $region37: #{tpu_custom_call.1} parent=27 // pred_check
          %p333 = pneg %p332
        $region38: #{tpu_custom_call.1} parent=27 // pred_check_branch
          %335 = sbr.rel (%p333) target = $region40
        $region39: #{tpu_custom_call.1} parent=27 // pred_region
          %v338 = vcombine.low %v330, %v331
          %340 = vst [vmem:[#allocation2] sm:$0xff] %v338
        $region40: #{tpu_custom_call.1} parent=27 // pred_fallthru
          _
        %p341 = scmp.gt.s32.totalorder %s27, 0
        // Predicated region
        $region41: #{tpu_custom_call.1} parent=27 // pred_check
          %p342 = pneg %p341
        $region42: #{tpu_custom_call.1} parent=27 // pred_check_branch
          %344 = sbr.rel (%p342) target = $region44
        $region43: #{tpu_custom_call.1} parent=27 // pred_region
          %v345 = vld [vmem:[#allocation2] sm:$0xff]
          %v348 = vcombine.low %v330, %v331
          %v350 = vadd.f32 %v345, %v348
          %351 = vst [vmem:[#allocation2] sm:$0xff] %v350
        $region44: #{tpu_custom_call.1} parent=27 // pred_fallthru
          _
        // Predicated region
        $region45: #{tpu_custom_call.1} parent=27 // pred_check
          %p352 = pneg %p332
        $region46: #{tpu_custom_call.1} parent=27 // pred_check_branch
          %354 = sbr.rel (%p352) target = $region48
        $region47: #{tpu_custom_call.1} parent=27 // pred_region
          %v355 = vld [vmem:[#allocation2] sm:$0xff]
          %356 = vst [vmem:[%s217] sm:$0xff] %v355
        $region48: #{tpu_custom_call.1} parent=27 // pred_fallthru
          _
        %s357 = sand.u32 %s98, 1
        %s358 = scalar_lea.sflag [#allocation5], %s357
        %s359 = sand.u32 %s98, 1
        %s360 = smul.addr %s359, 8
        %s361 = scalar_lea.vmem [#allocation8], %s360
        // Predicated region
        $region49: #{tpu_custom_call.1} parent=27 // pred_check
          %p362 = pneg %p108
        $region50: #{tpu_custom_call.1} parent=27 // pred_check_branch
          %364 = sbr.rel (%p362) target = $region52
        $region51: #{tpu_custom_call.1} parent=27 // pred_region
          %s366 = ssub.s32 128, 128
          %367 = vsyncadd %s358, %s366
          %s368 = smul.addr %s26, 2
          %s369 = smul.addr %s368, 64
          %s370 = scalar_lea.hbm %s2, %s369
          %s372 = sshll.u32 %s361, 4
          %s373 = int_to_ptr.vmem [resolvable:$true] %s372
          %375 = dma.vmem_to_hbm [thread:$0]  %s373, 128, %s370, %s358
        $region52: #{tpu_custom_call.1} parent=27 // pred_fallthru
          _
      $region28: #{tpu_custom_call.1} parent=5 // pred_fallthru
        _
      %p376 = scmp.le.s32.totalorder 2, %s17
      // Predicated region
      $region53: #{tpu_custom_call.1} parent=5 // pred_check
        %p377 = pneg %p376
      $region54: #{tpu_custom_call.1} parent=5 // pred_check_branch
        %379 = sbr.rel (%p377) target = $region56
      $region55: #{tpu_custom_call.1} parent=5 // pred_region
        %s380 = ssub.s32 %s17, 2
        // Predicated region
        $region57: #{tpu_custom_call.1} parent=55 // pred_check
          %p381 = pneg %p114
        $region58: #{tpu_custom_call.1} parent=55 // pred_check_branch
          %383 = sbr.rel (%p381) target = $region60
        $region59: #{tpu_custom_call.1} parent=55 // pred_region
          %s384 = sand.u32 %s99, 1
          %s385 = scalar_lea.sflag [#allocation5], %s384
          %s386 = sand.u32 %s99, 1
          %s387 = smul.addr %s386, 8
          %s388 = scalar_lea.vmem [#allocation8], %s387
          %389 = dma.done %s385, 128
        $region60: #{tpu_custom_call.1} parent=55 // pred_fallthru
          _
      $region56: #{tpu_custom_call.1} parent=5 // pred_fallthru
        _
    $region6: #{tpu_custom_call.1} parent=1 // loop_footer
      %s21 = sadd.s32 1, %s17
    $region7: #{tpu_custom_call.1} parent=1 // loop_footer_branch
      %16 = sbr.rel target = $region3
    $region8: #{tpu_custom_call.1} parent=1 // loop_exit
      _
    %390 = vsyncpa [#allocation4], 1
    %s391 = scalar_lea.sflag [#allocation4], 1
    %392 = vsyncpa %s391, 1
    %393 = vsyncpa [#allocation7], 1
    %s394 = scalar_lea.sflag [#allocation7], 1
    %395 = vsyncpa %s394, 1
    %396 = vsyncpa [#allocation5], 1
    %s397 = scalar_lea.sflag [#allocation5], 1
    %398 = vsyncpa %s397, 1

</llo_original>
